<compile_context>
chip_gen: v5e
topology: v5e:2x2
jax: 0.10.0
libtpu: 0.0.40
codegen_flags: <defaults>
</compile_context>

<pallas_src>
import jax
import jax.numpy as jnp
from jax import lax
from jax.experimental import pallas as pl
from jax.experimental.pallas import tpu as pltpu

_VMEM_LIMIT_BYTES = 48 * 1024 * 1024


def _attentive_pool_kernel(x_ref, w_ref, o_ref):
    # x_ref: (B_BLK, T, D)   w_ref: (1, D)   o_ref: (B_BLK, 1, D)
    x = x_ref[...]                                    # native dtype (f32 or bf16)
    bb, _, d = x.shape

    # Broadcast the score weight into a (B_BLK, 1, D) "query" so both
    # contractions use the standard batched-matmul pattern on the MXU.
    w = jnp.broadcast_to(w_ref[...], (bb, 1, d)).astype(x.dtype)

    # Linear(D, 1) scores on the MXU, f32 accumulate, lane-dense in T.
    # Bias omitted: softmax(s + b) == softmax(s).
    scores = jnp.einsum(
        "bqd,btd->bqt", w, x,
        preferred_element_type=jnp.float32,
        precision=lax.Precision.HIGHEST,
    )                                                 # (B_BLK, 1, T)

    # Numerically stable softmax over T (the lane axis). Exact reciprocal:
    # a single divide per row; approx=True previously failed the tolerance.
    m = jnp.max(scores, axis=-1, keepdims=True)       # (B_BLK, 1, 1)
    e = jnp.exp(scores - m)                           # (B_BLK, 1, T)
    att = e / jnp.sum(e, axis=-1, keepdims=True)      # (B_BLK, 1, T)

    # Weighted sum over T on the MXU: (B_BLK,1,T) @ (B_BLK,T,D) -> (B_BLK,1,D).
    pooled = jnp.einsum(
        "bqt,btd->bqd", att.astype(x.dtype), x,
        preferred_element_type=jnp.float32,
        precision=lax.Precision.HIGHEST,
    )                                                 # (B_BLK, 1, D)
    o_ref[...] = pooled.astype(o_ref.dtype)


def attentive_pooling(x, w, b=None, *, target_block_bytes=8 * 1024 * 1024):
    """x: (B, T, D), w: (1, D), b: (1, 1) [ignored: softmax shift invariance].

    Returns (B, D) in x.dtype. bf16 inputs are supported (MXU multiplies in
    bf16, accumulates in f32), halving HBM traffic on this mem-bound kernel.
    """
    del b  # Linear bias cannot change softmax output; dropped for speed.
    B, T, D = x.shape
    itemsize = jnp.dtype(x.dtype).itemsize
    row_bytes = max(1, T * D * itemsize)

    # Batch block sizing: aim for ~target_block_bytes per x slab, but never
    # request more than ~1/3 of the scoped VMEM budget (Pallas double-buffers
    # the input, plus small score/att temporaries).
    max_slab_bytes = _VMEM_LIMIT_BYTES // 3
    b_blk = max(1, min(target_block_bytes, max_slab_bytes) // row_bytes)
    if b_blk >= B:
        # Whole batch fits in one slab. A single grid step serializes onto one
        # TensorCore on v7x, so split when it stays 8-aligned and even.
        b_blk = B // 2 if (B >= 16 and B % 16 == 0) else B
    else:
        b_blk = min(B, max(8, (b_blk // 8) * 8))
    num_blocks = pl.cdiv(B, b_blk)
    # TODO(synk): if even b_blk == 1 exceeds the VMEM budget (huge T*D), tile T
    # with an innermost "arbitrary" grid axis + online-softmax accumulators.

    out = pl.pallas_call(
        _attentive_pool_kernel,
        out_shape=jax.ShapeDtypeStruct((B, 1, D), x.dtype),
        grid_spec=pltpu.PrefetchScalarGridSpec(
            num_scalar_prefetch=0,
            grid=(num_blocks,),
            in_specs=[
                pl.BlockSpec((b_blk, T, D), lambda i: (i, 0, 0)),  # x slab
                pl.BlockSpec((1, D), lambda i: (0, 0)),            # weight (loop-invariant)
            ],
            out_specs=pl.BlockSpec((b_blk, 1, D), lambda i: (i, 0, 0)),
        ),
        compiler_params=pltpu.CompilerParams(
            dimension_semantics=("parallel",),          # shards batch blocks across TCs
            vmem_limit_bytes=_VMEM_LIMIT_BYTES,
        ),
    )(x, w)
    return out.reshape(B, D)   # free reshape: drops the size-1 middle dim


def _reference(x, w, b):
    # Pure elementwise/VPU reference (exact f32): scores -> softmax -> pool.
    scores = jnp.sum(x * w[0][None, None, :], axis=-1) + b[0, 0]   # (B, T)
    att = jax.nn.softmax(scores, axis=-1)
    return jnp.sum(x * att[..., None], axis=1)                     # (B, D)


if __name__ == "__main__":
    B, T, D = 2, 8, 32

    key = jax.random.PRNGKey(0)
    kx, kw, kb = jax.random.split(key, 3)

    x = jax.random.normal(kx, (B, T, D), dtype=jnp.float32)

    # Deterministic init matching nn.Linear(input_dim, 1) default:
    # uniform(-1/sqrt(D), 1/sqrt(D)) for both weight and bias.
    bound = 1.0 / (D ** 0.5)
    w = jax.random.uniform(kw, (1, D), jnp.float32, -bound, bound)
    b = jax.random.uniform(kb, (1, 1), jnp.float32, -bound, bound)

    out = attentive_pooling(x, w, b)
    jax.block_until_ready(out)

    ref = _reference(x, w, b)
    assert out.shape == (B, D)
    # f32 everywhere; 1e-4 leaves margin for multi-pass MXU f32 accumulation.
    assert jnp.allclose(out, ref, atol=1e-4, rtol=1e-4), (out, ref)

    print("KERNEL_OK")
</pallas_src>

<mosaic_0001>
module attributes {stable_mosaic.version = 11 : i64} {
  func.func @_attentive_pool_kernel(%arg0: i32, %arg1: memref<2x8x32xf32, #tpu.memory_space<vmem>>, %arg2: memref<1x32xf32, #tpu.memory_space<vmem>>, %arg3: memref<2x1x32xf32, #tpu.memory_space<vmem>>) attributes {dimension_semantics = [#tpu.dimension_semantics<parallel>], iteration_bounds = array<i64: 1>, scalar_prefetch = 0 : i64, scratch_operands = 0 : i64, tpu.core_type = #tpu.core_type<tc>, window_params = [{transform_indices = @transform_0, window_bounds = array<i64: 2, 8, 32>}, {pipeline_mode = #tpu.pipeline_mode<synchronous>, transform_indices = @transform_1, window_bounds = array<i64: 1, 32>}, {transform_indices = @transform_2, window_bounds = array<i64: 2, 1, 32>}]} {
    %c0 = arith.constant 0 : index
    %c0_0 = arith.constant 0 : index
    %c0_1 = arith.constant 0 : index
    %0 = vector.load %arg1[%c0, %c0_0, %c0_1] : memref<2x8x32xf32, #tpu.memory_space<vmem>>, vector<2x8x32xf32>
    %c0_2 = arith.constant 0 : index
    %c0_3 = arith.constant 0 : index
    %1 = vector.load %arg2[%c0_2, %c0_3] : memref<1x32xf32, #tpu.memory_space<vmem>>, vector<1x32xf32>
    %2 = vector.shape_cast %1 : vector<1x32xf32> to vector<1x1x32xf32>
    %3 = vector.broadcast %2 : vector<1x1x32xf32> to vector<2x1x32xf32>
    "tpu.trace_start"() <{level = 10 : i32, message = "bqd,btd->bqt"}> : () -> ()
    %cst = arith.constant dense<0.000000e+00> : vector<2x1x8xf32>
    %4 = tpu.matmul %3, %0, %cst {dimension_numbers = #tpu.dot_dimension_numbers<[2], [2], [1], [1], [0, 0, 0, 1, 1, 1], [0], [0]>, precision = #tpu.contract_precision<fp32>} : vector<2x1x32xf32>, vector<2x8x32xf32>, vector<2x1x8xf32> -> vector<2x1x8xf32>
    "tpu.trace_stop"() : () -> ()
    %cst_4 = arith.constant dense<0xFF800000> : vector<2x1xf32>
    %5 = vector.multi_reduction <maximumf>, %4, %cst_4 [2] : vector<2x1x8xf32> to vector<2x1xf32>
    %6 = vector.shape_cast %5 : vector<2x1xf32> to vector<2x1x1xf32>
    %7 = vector.broadcast %6 : vector<2x1x1xf32> to vector<2x1x8xf32>
    %8 = arith.subf %4, %7 : vector<2x1x8xf32>
    %9 = math.exp %8 : vector<2x1x8xf32>
    %cst_5 = arith.constant dense<0.000000e+00> : vector<2x1xf32>
    %10 = vector.multi_reduction <add>, %9, %cst_5 [2] : vector<2x1x8xf32> to vector<2x1xf32>
    %11 = vector.shape_cast %10 : vector<2x1xf32> to vector<2x1x1xf32>
    %12 = vector.broadcast %11 : vector<2x1x1xf32> to vector<2x1x8xf32>
    %13 = arith.divf %9, %12 : vector<2x1x8xf32>
    "tpu.trace_start"() <{level = 10 : i32, message = "bqt,btd->bqd"}> : () -> ()
    %cst_6 = arith.constant dense<0.000000e+00> : vector<2x1x32xf32>
    %14 = tpu.matmul %13, %0, %cst_6 {dimension_numbers = #tpu.dot_dimension_numbers<[2], [1], [1], [2], [0, 0, 0, 1, 1, 2], [0], [0]>, precision = #tpu.contract_precision<fp32>} : vector<2x1x8xf32>, vector<2x8x32xf32>, vector<2x1x32xf32> -> vector<2x1x32xf32>
    "tpu.trace_stop"() : () -> ()
    %c0_7 = arith.constant 0 : index
    %c0_8 = arith.constant 0 : index
    %c0_9 = arith.constant 0 : index
    %15 = vector.load %arg3[%c0_7, %c0_8, %c0_9] : memref<2x1x32xf32, #tpu.memory_space<vmem>>, vector<2x1x32xf32>
    tpu.vector_store %arg3[%c0_7, %c0_8, %c0_9], %14 {strides = array<i32>} : memref<2x1x32xf32, #tpu.memory_space<vmem>>, vector<2x1x32xf32>,
    return
  }
  func.func @transform_0(%arg0: i32) -> (i32, i32, i32) {
    %c0_i32 = arith.constant 0 : i32
    %c0_i32_0 = arith.constant 0 : i32
    %c0_i32_1 = arith.constant 0 : i32
    return %arg0, %c0_i32, %c0_i32_0 : i32, i32, i32
  }
  func.func @transform_1(%arg0: i32) -> (i32, i32) {
    %c0_i32 = arith.constant 0 : i32
    %c0_i32_0 = arith.constant 0 : i32
    %c0_i32_1 = arith.constant 0 : i32
    return %c0_i32, %c0_i32_0 : i32, i32
  }
  func.func @transform_2(%arg0: i32) -> (i32, i32, i32) {
    %c0_i32 = arith.constant 0 : i32
    %c0_i32_0 = arith.constant 0 : i32
    %c0_i32_1 = arith.constant 0 : i32
    return %arg0, %c0_i32, %c0_i32_0 : i32, i32, i32
  }
}

</mosaic_0001>

<llo_original>
// kernel: tpu_custom_call.1
$region0: #{tpu_custom_call.1}
  #allocation0 [shape = 'u32[]', space=smem, size = 0x4, offset = 0x4, fixed_abs, tag = 'smem constant byte address 0x4 - core index']
  #allocation1 [shape = 'u32[72,128]{1,0:T(1,128)}', space=vmem, size = 0x9000, scoped, tag = 'internal scratch']
  %s0 = inlined_call_operand.hbm [shape: f32[2,8,32], index: 0, kind: input, shape index: {}]
  %s1 = inlined_call_operand.hbm [shape: f32[1,32], index: 1, kind: input, shape index: {}]
  %s2 = inlined_call_operand.hbm [shape: f32[2,1,32], index: 2, kind: output, shape index: {}]
  %s3 = sld [smem:[#allocation0]]
  $region26: #{tpu_custom_call.1} parent=0
    _
  %s5 = ssub.s32 1, %s3
  %s6 = scalar_select 0, %s5, %s3
  $region1: #{tpu_custom_call.1} parent=0
    #allocation2 [shape = 'u8[8192]{0}', space=vmem, size = 0x2000, scoped, tag = 'input window, operand 0, single buffered']
    #allocation3 [shape = 's32[1]{0}', space=sflag, size = 0x4, scoped, tag = 'scoped memory for tpu_custom_call.1']
    #allocation4 [shape = 's32[1]{0}', space=sflag, size = 0x4, scoped, tag = 'scoped memory for tpu_custom_call.1']
    #allocation5 [shape = 'u8[512]{0}', space=vmem, size = 0x400, scoped, tag = 'input window, operand 1, single buffered']
    #allocation6 [shape = 's32[1]{0}', space=sflag, size = 0x4, scoped, tag = 'scoped memory for tpu_custom_call.1']
    #allocation7 [shape = 'u8[1024]{0}', space=vmem, size = 0x400, scoped, tag = 'output window, operand 0, single buffered']
    %7 = vsyncpa [#allocation3], 0
    %8 = vsyncpa [#allocation6], 0
    %9 = vsyncpa [#allocation4], 0
    // Predicated region
    $region2: #{tpu_custom_call.1} parent=1 // pred_check
      _
    $region3: #{tpu_custom_call.1} parent=1 // pred_check_branch
      %11 = sbr.rel (0) target = $region5
    $region4: #{tpu_custom_call.1} parent=1 // pred_region
      %13 = vsyncadd [#allocation3], 0
      %s14 = sshll.u32 %s0, 4
      %s15 = int_to_ptr.hbm [resolvable:$true] %s14
      %s16 = sshll.u32 [#allocation2], 4
      %s17 = int_to_ptr.vmem [resolvable:$true] %s16
      %22 = dma.hbm_to_vmem [thread:$0]  %s15, 256, %s17, [#allocation3], 128, 128, 8
    $region5: #{tpu_custom_call.1} parent=1 // pred_fallthru
      _
    // Predicated region
    $region6: #{tpu_custom_call.1} parent=1 // pred_check
      _
    $region7: #{tpu_custom_call.1} parent=1 // pred_check_branch
      %24 = sbr.rel (0) target = $region9
    $region8: #{tpu_custom_call.1} parent=1 // pred_region
      %26 = vsyncadd [#allocation6], 0
      %s28 = sshll.u32 %s1, 4
      %s29 = int_to_ptr.hbm [resolvable:$true] %s28
      %s30 = sshll.u32 [#allocation5], 4
      %s31 = int_to_ptr.vmem [resolvable:$true] %s30
      %33 = dma.hbm_to_vmem [thread:$0]  %s29, 16, %s31, [#allocation6]
    $region9: #{tpu_custom_call.1} parent=1 // pred_fallthru
      _
    // Predicated region
    $region10: #{tpu_custom_call.1} parent=1 // pred_check
      _
    $region11: #{tpu_custom_call.1} parent=1 // pred_check_branch
      %35 = sbr.rel (0) target = $region13
    $region12: #{tpu_custom_call.1} parent=1 // pred_region
      %37 = dma.done [#allocation3], 256
    $region13: #{tpu_custom_call.1} parent=1 // pred_fallthru
      _
    // Predicated region
    $region14: #{tpu_custom_call.1} parent=1 // pred_check
      _
    $region15: #{tpu_custom_call.1} parent=1 // pred_check_branch
      %39 = sbr.rel (0) target = $region17
    $region16: #{tpu_custom_call.1} parent=1 // pred_region
      %41 = dma.done [#allocation6], 16
    $region17: #{tpu_custom_call.1} parent=1 // pred_fallthru
      _
    %v42 = vld [vmem:[#allocation2] sm:$0xff]
    %v43 = vld [vmem:[#allocation2 + $0x8] sm:$0xff]
    %v44 = vld [vmem:[#allocation5] sm:$0x1]
    %vm45 = vcmask 261120
    %v47 = vsel %vm45, %v44, 0
    %v50 = vsel %vm45, %v42, 0
    %52 = vmatpush.xpose.msra.mxu0 0.0
    %53 = vmatpush.xpose.msra.mxu0 0.0
    %54 = vmatpush.xpose.msra.mxu0 0.0
    %55 = vmatpush.xpose.msra.mxu0 0.0
    %56 = vmatpush.xpose.msra.mxu0 0.0
    %57 = vmatpush.xpose.msra.mxu0 0.0
    %58 = vmatpush.xpose.msra.mxu0 0.0
    %59 = vmatpush.xpose.msra.mxu0 0.0
    %60 = vmatpush.xpose.msra.mxu0 0.0
    %61 = vmatpush.xpose.msra.mxu0 0.0
    %62 = vmatpush.xpose.msra.mxu0 0.0
    %63 = vmatpush.xpose.msra.mxu0 0.0
    %64 = vmatpush.xpose.msra.mxu0 0.0
    %65 = vmatpush.xpose.msra.mxu0 0.0
    %66 = vmatpush.xpose.msra.mxu0 0.0
    %v67 = vand.u32 %v50, 4294901760
    %68 = vmatpush.xpose.msra.mxu0 %v67
    %v69 = vand.u32 %v47, 4294901760
    %v70 = vsub.f32 %v47, %v69
    %v71 = vand.u32 %v70, 4294901760
    %v72 = vsub.f32 %v70, %v71
    %v73 = vand.u32 %v72, 4294901760
    %74 = vmatmul.f32.gmra.mxu0 %v73
    %v75 = vpop.f32.mrf.mxu0
    %v76 = vadd.f32 0.0, %v75
    %77 = vdwg.mxu0
    %78 = vmatpush.xpose.msra.mxu0 0.0
    %79 = vmatpush.xpose.msra.mxu0 0.0
    %80 = vmatpush.xpose.msra.mxu0 0.0
    %81 = vmatpush.xpose.msra.mxu0 0.0
    %82 = vmatpush.xpose.msra.mxu0 0.0
    %83 = vmatpush.xpose.msra.mxu0 0.0
    %84 = vmatpush.xpose.msra.mxu0 0.0
    %85 = vmatpush.xpose.msra.mxu0 0.0
    %86 = vmatpush.xpose.msra.mxu0 0.0
    %87 = vmatpush.xpose.msra.mxu0 0.0
    %88 = vmatpush.xpose.msra.mxu0 0.0
    %89 = vmatpush.xpose.msra.mxu0 0.0
    %90 = vmatpush.xpose.msra.mxu0 0.0
    %91 = vmatpush.xpose.msra.mxu0 0.0
    %92 = vmatpush.xpose.msra.mxu0 0.0
    %v93 = vand.u32 %v50, 4294901760
    %v94 = vsub.f32 %v50, %v93
    %v95 = vand.u32 %v94, 4294901760
    %v96 = vsub.f32 %v94, %v95
    %v97 = vand.u32 %v96, 4294901760
    %98 = vmatpush.xpose.msra.mxu0 %v97
    %v99 = vand.u32 %v47, 4294901760
    %100 = vmatmul.f32.gmra.mxu0 %v99
    %v101 = vpop.f32.mrf.mxu0
    %v102 = vadd.f32 %v76, %v101
    %103 = vdwg.mxu0
    %104 = vmatpush.xpose.msra.mxu0 0.0
    %105 = vmatpush.xpose.msra.mxu0 0.0
    %106 = vmatpush.xpose.msra.mxu0 0.0
    %107 = vmatpush.xpose.msra.mxu0 0.0
    %108 = vmatpush.xpose.msra.mxu0 0.0
    %109 = vmatpush.xpose.msra.mxu0 0.0
    %110 = vmatpush.xpose.msra.mxu0 0.0
    %111 = vmatpush.xpose.msra.mxu0 0.0
    %112 = vmatpush.xpose.msra.mxu0 0.0
    %113 = vmatpush.xpose.msra.mxu0 0.0
    %114 = vmatpush.xpose.msra.mxu0 0.0
    %115 = vmatpush.xpose.msra.mxu0 0.0
    %116 = vmatpush.xpose.msra.mxu0 0.0
    %117 = vmatpush.xpose.msra.mxu0 0.0
    %118 = vmatpush.xpose.msra.mxu0 0.0
    %v119 = vand.u32 %v50, 4294901760
    %v120 = vsub.f32 %v50, %v119
    %121 = vmatpush.xpose.msra.mxu0 %v120
    %v122 = vand.u32 %v47, 4294901760
    %v123 = vsub.f32 %v47, %v122
    %124 = vmatmul.f32.gmra.mxu0 %v123
    %v125 = vpop.f32.mrf.mxu0
    %v126 = vadd.f32 %v102, %v125
    %127 = vdwg.mxu0
    %128 = vmatpush.xpose.msra.mxu0 0.0
    %129 = vmatpush.xpose.msra.mxu0 0.0
    %130 = vmatpush.xpose.msra.mxu0 0.0
    %131 = vmatpush.xpose.msra.mxu0 0.0
    %132 = vmatpush.xpose.msra.mxu0 0.0
    %133 = vmatpush.xpose.msra.mxu0 0.0
    %134 = vmatpush.xpose.msra.mxu0 0.0
    %135 = vmatpush.xpose.msra.mxu0 0.0
    %136 = vmatpush.xpose.msra.mxu0 0.0
    %137 = vmatpush.xpose.msra.mxu0 0.0
    %138 = vmatpush.xpose.msra.mxu0 0.0
    %139 = vmatpush.xpose.msra.mxu0 0.0
    %140 = vmatpush.xpose.msra.mxu0 0.0
    %141 = vmatpush.xpose.msra.mxu0 0.0
    %142 = vmatpush.xpose.msra.mxu0 0.0
    %v143 = vand.u32 %v50, 4294901760
    %144 = vmatpush.xpose.msra.mxu0 %v143
    %v145 = vand.u32 %v47, 4294901760
    %v146 = vsub.f32 %v47, %v145
    %v147 = vand.u32 %v146, 4294901760
    %148 = vmatmul.f32.gmra.mxu0 %v147
    %v149 = vpop.f32.mrf.mxu0
    %v150 = vadd.f32 %v126, %v149
    %151 = vdwg.mxu0
    %152 = vmatpush.xpose.msra.mxu0 0.0
    %153 = vmatpush.xpose.msra.mxu0 0.0
    %154 = vmatpush.xpose.msra.mxu0 0.0
    %155 = vmatpush.xpose.msra.mxu0 0.0
    %156 = vmatpush.xpose.msra.mxu0 0.0
    %157 = vmatpush.xpose.msra.mxu0 0.0
    %158 = vmatpush.xpose.msra.mxu0 0.0
    %159 = vmatpush.xpose.msra.mxu0 0.0
    %160 = vmatpush.xpose.msra.mxu0 0.0
    %161 = vmatpush.xpose.msra.mxu0 0.0
    %162 = vmatpush.xpose.msra.mxu0 0.0
    %163 = vmatpush.xpose.msra.mxu0 0.0
    %164 = vmatpush.xpose.msra.mxu0 0.0
    %165 = vmatpush.xpose.msra.mxu0 0.0
    %166 = vmatpush.xpose.msra.mxu0 0.0
    %v167 = vand.u32 %v50, 4294901760
    %v168 = vsub.f32 %v50, %v167
    %v169 = vand.u32 %v168, 4294901760
    %170 = vmatpush.xpose.msra.mxu0 %v169
    %v171 = vand.u32 %v47, 4294901760
    %172 = vmatmul.f32.gmra.mxu0 %v171
    %v173 = vpop.f32.mrf.mxu0
    %v174 = vadd.f32 %v150, %v173
    %175 = vdwg.mxu0
    %176 = vmatpush.xpose.msra.mxu0 0.0
    %177 = vmatpush.xpose.msra.mxu0 0.0
    %178 = vmatpush.xpose.msra.mxu0 0.0
    %179 = vmatpush.xpose.msra.mxu0 0.0
    %180 = vmatpush.xpose.msra.mxu0 0.0
    %181 = vmatpush.xpose.msra.mxu0 0.0
    %182 = vmatpush.xpose.msra.mxu0 0.0
    %183 = vmatpush.xpose.msra.mxu0 0.0
    %184 = vmatpush.xpose.msra.mxu0 0.0
    %185 = vmatpush.xpose.msra.mxu0 0.0
    %186 = vmatpush.xpose.msra.mxu0 0.0
    %187 = vmatpush.xpose.msra.mxu0 0.0
    %188 = vmatpush.xpose.msra.mxu0 0.0
    %189 = vmatpush.xpose.msra.mxu0 0.0
    %190 = vmatpush.xpose.msra.mxu0 0.0
    %v191 = vand.u32 %v50, 4294901760
    %192 = vmatpush.xpose.msra.mxu0 %v191
    %v193 = vand.u32 %v47, 4294901760
    %194 = vmatmul.f32.gmra.mxu0 %v193
    %v195 = vpop.f32.mrf.mxu0
    %v196 = vadd.f32 %v174, %v195
    %197 = vdwg.mxu0
    %v199 = vsel %vm45, %v43, 0
    %201 = vmatpush.xpose.msra.mxu0 0.0
    %202 = vmatpush.xpose.msra.mxu0 0.0
    %203 = vmatpush.xpose.msra.mxu0 0.0
    %204 = vmatpush.xpose.msra.mxu0 0.0
    %205 = vmatpush.xpose.msra.mxu0 0.0
    %206 = vmatpush.xpose.msra.mxu0 0.0
    %207 = vmatpush.xpose.msra.mxu0 0.0
    %208 = vmatpush.xpose.msra.mxu0 0.0
    %209 = vmatpush.xpose.msra.mxu0 0.0
    %210 = vmatpush.xpose.msra.mxu0 0.0
    %211 = vmatpush.xpose.msra.mxu0 0.0
    %212 = vmatpush.xpose.msra.mxu0 0.0
    %213 = vmatpush.xpose.msra.mxu0 0.0
    %214 = vmatpush.xpose.msra.mxu0 0.0
    %215 = vmatpush.xpose.msra.mxu0 0.0
    %v216 = vand.u32 %v199, 4294901760
    %217 = vmatpush.xpose.msra.mxu0 %v216
    %v218 = vand.u32 %v47, 4294901760
    %v219 = vsub.f32 %v47, %v218
    %v220 = vand.u32 %v219, 4294901760
    %v221 = vsub.f32 %v219, %v220
    %v222 = vand.u32 %v221, 4294901760
    %223 = vmatmul.f32.gmra.mxu0 %v222
    %v224 = vpop.f32.mrf.mxu0
    %v225 = vadd.f32 0.0, %v224
    %226 = vdwg.mxu0
    %227 = vmatpush.xpose.msra.mxu0 0.0
    %228 = vmatpush.xpose.msra.mxu0 0.0
    %229 = vmatpush.xpose.msra.mxu0 0.0
    %230 = vmatpush.xpose.msra.mxu0 0.0
    %231 = vmatpush.xpose.msra.mxu0 0.0
    %232 = vmatpush.xpose.msra.mxu0 0.0
    %233 = vmatpush.xpose.msra.mxu0 0.0
    %234 = vmatpush.xpose.msra.mxu0 0.0
    %235 = vmatpush.xpose.msra.mxu0 0.0
    %236 = vmatpush.xpose.msra.mxu0 0.0
    %237 = vmatpush.xpose.msra.mxu0 0.0
    %238 = vmatpush.xpose.msra.mxu0 0.0
    %239 = vmatpush.xpose.msra.mxu0 0.0
    %240 = vmatpush.xpose.msra.mxu0 0.0
    %241 = vmatpush.xpose.msra.mxu0 0.0
    %v242 = vand.u32 %v199, 4294901760
    %v243 = vsub.f32 %v199, %v242
    %v244 = vand.u32 %v243, 4294901760
    %v245 = vsub.f32 %v243, %v244
    %v246 = vand.u32 %v245, 4294901760
    %247 = vmatpush.xpose.msra.mxu0 %v246
    %v248 = vand.u32 %v47, 4294901760
    %249 = vmatmul.f32.gmra.mxu0 %v248
    %v250 = vpop.f32.mrf.mxu0
    %v251 = vadd.f32 %v225, %v250
    %252 = vdwg.mxu0
    %253 = vmatpush.xpose.msra.mxu0 0.0
    %254 = vmatpush.xpose.msra.mxu0 0.0
    %255 = vmatpush.xpose.msra.mxu0 0.0
    %256 = vmatpush.xpose.msra.mxu0 0.0
    %257 = vmatpush.xpose.msra.mxu0 0.0
    %258 = vmatpush.xpose.msra.mxu0 0.0
    %259 = vmatpush.xpose.msra.mxu0 0.0
    %260 = vmatpush.xpose.msra.mxu0 0.0
    %261 = vmatpush.xpose.msra.mxu0 0.0
    %262 = vmatpush.xpose.msra.mxu0 0.0
    %263 = vmatpush.xpose.msra.mxu0 0.0
    %264 = vmatpush.xpose.msra.mxu0 0.0
    %265 = vmatpush.xpose.msra.mxu0 0.0
    %266 = vmatpush.xpose.msra.mxu0 0.0
    %267 = vmatpush.xpose.msra.mxu0 0.0
    %v268 = vand.u32 %v199, 4294901760
    %v269 = vsub.f32 %v199, %v268
    %270 = vmatpush.xpose.msra.mxu0 %v269
    %v271 = vand.u32 %v47, 4294901760
    %v272 = vsub.f32 %v47, %v271
    %273 = vmatmul.f32.gmra.mxu0 %v272
    %v274 = vpop.f32.mrf.mxu0
    %v275 = vadd.f32 %v251, %v274
    %276 = vdwg.mxu0
    %277 = vmatpush.xpose.msra.mxu0 0.0
    %278 = vmatpush.xpose.msra.mxu0 0.0
    %279 = vmatpush.xpose.msra.mxu0 0.0
    %280 = vmatpush.xpose.msra.mxu0 0.0
    %281 = vmatpush.xpose.msra.mxu0 0.0
    %282 = vmatpush.xpose.msra.mxu0 0.0
    %283 = vmatpush.xpose.msra.mxu0 0.0
    %284 = vmatpush.xpose.msra.mxu0 0.0
    %285 = vmatpush.xpose.msra.mxu0 0.0
    %286 = vmatpush.xpose.msra.mxu0 0.0
    %287 = vmatpush.xpose.msra.mxu0 0.0
    %288 = vmatpush.xpose.msra.mxu0 0.0
    %289 = vmatpush.xpose.msra.mxu0 0.0
    %290 = vmatpush.xpose.msra.mxu0 0.0
    %291 = vmatpush.xpose.msra.mxu0 0.0
    %v292 = vand.u32 %v199, 4294901760
    %293 = vmatpush.xpose.msra.mxu0 %v292
    %v294 = vand.u32 %v47, 4294901760
    %v295 = vsub.f32 %v47, %v294
    %v296 = vand.u32 %v295, 4294901760
    %297 = vmatmul.f32.gmra.mxu0 %v296
    %v298 = vpop.f32.mrf.mxu0
    %v299 = vadd.f32 %v275, %v298
    %300 = vdwg.mxu0
    %301 = vmatpush.xpose.msra.mxu0 0.0
    %302 = vmatpush.xpose.msra.mxu0 0.0
    %303 = vmatpush.xpose.msra.mxu0 0.0
    %304 = vmatpush.xpose.msra.mxu0 0.0
    %305 = vmatpush.xpose.msra.mxu0 0.0
    %306 = vmatpush.xpose.msra.mxu0 0.0
    %307 = vmatpush.xpose.msra.mxu0 0.0
    %308 = vmatpush.xpose.msra.mxu0 0.0
    %309 = vmatpush.xpose.msra.mxu0 0.0
    %310 = vmatpush.xpose.msra.mxu0 0.0
    %311 = vmatpush.xpose.msra.mxu0 0.0
    %312 = vmatpush.xpose.msra.mxu0 0.0
    %313 = vmatpush.xpose.msra.mxu0 0.0
    %314 = vmatpush.xpose.msra.mxu0 0.0
    %315 = vmatpush.xpose.msra.mxu0 0.0
    %v316 = vand.u32 %v199, 4294901760
    %v317 = vsub.f32 %v199, %v316
    %v318 = vand.u32 %v317, 4294901760
    %319 = vmatpush.xpose.msra.mxu0 %v318
    %v320 = vand.u32 %v47, 4294901760
    %321 = vmatmul.f32.gmra.mxu0 %v320
    %v322 = vpop.f32.mrf.mxu0
    %v323 = vadd.f32 %v299, %v322
    %324 = vdwg.mxu0
    %325 = vmatpush.xpose.msra.mxu0 0.0
    %326 = vmatpush.xpose.msra.mxu0 0.0
    %327 = vmatpush.xpose.msra.mxu0 0.0
    %328 = vmatpush.xpose.msra.mxu0 0.0
    %329 = vmatpush.xpose.msra.mxu0 0.0
    %330 = vmatpush.xpose.msra.mxu0 0.0
    %331 = vmatpush.xpose.msra.mxu0 0.0
    %332 = vmatpush.xpose.msra.mxu0 0.0
    %333 = vmatpush.xpose.msra.mxu0 0.0
    %334 = vmatpush.xpose.msra.mxu0 0.0
    %335 = vmatpush.xpose.msra.mxu0 0.0
    %336 = vmatpush.xpose.msra.mxu0 0.0
    %337 = vmatpush.xpose.msra.mxu0 0.0
    %338 = vmatpush.xpose.msra.mxu0 0.0
    %339 = vmatpush.xpose.msra.mxu0 0.0
    %v340 = vand.u32 %v199, 4294901760
    %341 = vmatpush.xpose.msra.mxu0 %v340
    %v342 = vand.u32 %v47, 4294901760
    %343 = vmatmul.f32.gmra.mxu0 %v342
    %v344 = vpop.f32.mrf.mxu0
    %v345 = vadd.f32 %v323, %v344
    %346 = vdwg.mxu0
    %vm347 = vcmask 57344
    %v348 = vsel %vm347, %v196, -inf
    %349 = vmax.xlane.f32.xlu0 %v348
    %v350 = vpop.xlane.xlu0 %349
    %v351 = vsel %vm347, %v345, -inf
    %352 = vmax.xlane.f32.xlu0 %v351
    %v353 = vpop.xlane.xlu0 %352
    %v354 = vsub.f32 %v196, %v350
    %v355 = vsub.f32 %v345, %v353
    %v356 = vmul.f32 %v354, 1.442695
    %v357 = vpow.pop %v356
    %v358 = vmul.f32 %v355, 1.442695
    %v359 = vpow.pop %v358
    %v360 = vsel %vm347, %v357, 0.0
    %361 = vadd.xlane.f32.xlu0 %v360
    %v362 = vpop.xlane.xlu0 %361
    %v363 = vsel %vm347, %v359, 0.0
    %364 = vadd.xlane.f32.xlu0 %v363
    %v365 = vpop.xlane.xlu0 %364
    %v366 = vrcp.pop %v362
    %v367 = vmul.f32 %v362, %v366
    %v368 = vsub.f32 1.0, %v367
    %v369 = vmul.f32 %v366, %v368
    %v370 = vadd.f32 %v366, %v369
    %vm371 = vweird.f32 %v362
    %vm372 = vweird.f32 %v366
    %vm373 = vmor %vm371, %vm372
    %v374 = vsel %vm373, %v366, %v370
    %v375 = vand.u32 2147483647, %v362
    %vm376 = vcmp.eq.f32.partialorder %v375, 8.507059e+37
    %v377 = vand.u32 %v362, 2147483648
    %v378 = vor.u32 1.1754944e-38, %v377
    %v379 = vsel %vm376, %v378, %v374
    %v380 = vmul.f32 %v357, %v379
    %v381 = vrcp.pop %v365
    %v382 = vmul.f32 %v365, %v381
    %v383 = vsub.f32 1.0, %v382
    %v384 = vmul.f32 %v381, %v383
    %v385 = vadd.f32 %v381, %v384
    %vm386 = vweird.f32 %v365
    %vm387 = vweird.f32 %v381
    %vm388 = vmor %vm386, %vm387
    %v389 = vsel %vm388, %v381, %v385
    %v390 = vand.u32 2147483647, %v365
    %vm391 = vcmp.eq.f32.partialorder %v390, 8.507059e+37
    %v392 = vand.u32 %v365, 2147483648
    %v393 = vor.u32 1.1754944e-38, %v392
    %v394 = vsel %vm391, %v393, %v389
    %v395 = vmul.f32 %v359, %v394
    %vm396 = vcmask 64512
    %v398 = vsel %vm396, %v380, 0
    %400 = vmatpush.msra.mxu0 0.0
    %401 = vmatpush.msra.mxu0 0.0
    %402 = vmatpush.msra.mxu0 0.0
    %403 = vmatpush.msra.mxu0 0.0
    %404 = vmatpush.msra.mxu0 0.0
    %405 = vmatpush.msra.mxu0 0.0
    %406 = vmatpush.msra.mxu0 0.0
    %407 = vmatpush.msra.mxu0 0.0
    %408 = vmatpush.msra.mxu0 0.0
    %409 = vmatpush.msra.mxu0 0.0
    %410 = vmatpush.msra.mxu0 0.0
    %411 = vmatpush.msra.mxu0 0.0
    %412 = vmatpush.msra.mxu0 0.0
    %413 = vmatpush.msra.mxu0 0.0
    %414 = vmatpush.msra.mxu0 0.0
    %v415 = vand.u32 %v42, 4294901760
    %416 = vmatpush.msra.mxu0 %v415
    %v417 = vand.u32 %v398, 4294901760
    %v418 = vsub.f32 %v398, %v417
    %v419 = vand.u32 %v418, 4294901760
    %v420 = vsub.f32 %v418, %v419
    %v421 = vand.u32 %v420, 4294901760
    %422 = vmatmul.f32.gmra.mxu0 %v421
    %v423 = vpop.f32.mrf.mxu0
    %v424 = vadd.f32 0.0, %v423
    %425 = vdwg.mxu0
    %426 = vmatpush.msra.mxu0 0.0
    %427 = vmatpush.msra.mxu0 0.0
    %428 = vmatpush.msra.mxu0 0.0
    %429 = vmatpush.msra.mxu0 0.0
    %430 = vmatpush.msra.mxu0 0.0
    %431 = vmatpush.msra.mxu0 0.0
    %432 = vmatpush.msra.mxu0 0.0
    %433 = vmatpush.msra.mxu0 0.0
    %434 = vmatpush.msra.mxu0 0.0
    %435 = vmatpush.msra.mxu0 0.0
    %436 = vmatpush.msra.mxu0 0.0
    %437 = vmatpush.msra.mxu0 0.0
    %438 = vmatpush.msra.mxu0 0.0
    %439 = vmatpush.msra.mxu0 0.0
    %440 = vmatpush.msra.mxu0 0.0
    %v441 = vand.u32 %v42, 4294901760
    %v442 = vsub.f32 %v42, %v441
    %v443 = vand.u32 %v442, 4294901760
    %v444 = vsub.f32 %v442, %v443
    %v445 = vand.u32 %v444, 4294901760
    %446 = vmatpush.msra.mxu0 %v445
    %v447 = vand.u32 %v398, 4294901760
    %448 = vmatmul.f32.gmra.mxu0 %v447
    %v449 = vpop.f32.mrf.mxu0
    %v450 = vadd.f32 %v424, %v449
    %451 = vdwg.mxu0
    %452 = vmatpush.msra.mxu0 0.0
    %453 = vmatpush.msra.mxu0 0.0
    %454 = vmatpush.msra.mxu0 0.0
    %455 = vmatpush.msra.mxu0 0.0
    %456 = vmatpush.msra.mxu0 0.0
    %457 = vmatpush.msra.mxu0 0.0
    %458 = vmatpush.msra.mxu0 0.0
    %459 = vmatpush.msra.mxu0 0.0
    %460 = vmatpush.msra.mxu0 0.0
    %461 = vmatpush.msra.mxu0 0.0
    %462 = vmatpush.msra.mxu0 0.0
    %463 = vmatpush.msra.mxu0 0.0
    %464 = vmatpush.msra.mxu0 0.0
    %465 = vmatpush.msra.mxu0 0.0
    %466 = vmatpush.msra.mxu0 0.0
    %v467 = vand.u32 %v42, 4294901760
    %v468 = vsub.f32 %v42, %v467
    %469 = vmatpush.msra.mxu0 %v468
    %v470 = vand.u32 %v398, 4294901760
    %v471 = vsub.f32 %v398, %v470
    %472 = vmatmul.f32.gmra.mxu0 %v471
    %v473 = vpop.f32.mrf.mxu0
    %v474 = vadd.f32 %v450, %v473
    %475 = vdwg.mxu0
    %476 = vmatpush.msra.mxu0 0.0
    %477 = vmatpush.msra.mxu0 0.0
    %478 = vmatpush.msra.mxu0 0.0
    %479 = vmatpush.msra.mxu0 0.0
    %480 = vmatpush.msra.mxu0 0.0
    %481 = vmatpush.msra.mxu0 0.0
    %482 = vmatpush.msra.mxu0 0.0
    %483 = vmatpush.msra.mxu0 0.0
    %484 = vmatpush.msra.mxu0 0.0
    %485 = vmatpush.msra.mxu0 0.0
    %486 = vmatpush.msra.mxu0 0.0
    %487 = vmatpush.msra.mxu0 0.0
    %488 = vmatpush.msra.mxu0 0.0
    %489 = vmatpush.msra.mxu0 0.0
    %490 = vmatpush.msra.mxu0 0.0
    %v491 = vand.u32 %v42, 4294901760
    %492 = vmatpush.msra.mxu0 %v491
    %v493 = vand.u32 %v398, 4294901760
    %v494 = vsub.f32 %v398, %v493
    %v495 = vand.u32 %v494, 4294901760
    %496 = vmatmul.f32.gmra.mxu0 %v495
    %v497 = vpop.f32.mrf.mxu0
    %v498 = vadd.f32 %v474, %v497
    %499 = vdwg.mxu0
    %500 = vmatpush.msra.mxu0 0.0
    %501 = vmatpush.msra.mxu0 0.0
    %502 = vmatpush.msra.mxu0 0.0
    %503 = vmatpush.msra.mxu0 0.0
    %504 = vmatpush.msra.mxu0 0.0
    %505 = vmatpush.msra.mxu0 0.0
    %506 = vmatpush.msra.mxu0 0.0
    %507 = vmatpush.msra.mxu0 0.0
    %508 = vmatpush.msra.mxu0 0.0
    %509 = vmatpush.msra.mxu0 0.0
    %510 = vmatpush.msra.mxu0 0.0
    %511 = vmatpush.msra.mxu0 0.0
    %512 = vmatpush.msra.mxu0 0.0
    %513 = vmatpush.msra.mxu0 0.0
    %514 = vmatpush.msra.mxu0 0.0
    %v515 = vand.u32 %v42, 4294901760
    %v516 = vsub.f32 %v42, %v515
    %v517 = vand.u32 %v516, 4294901760
    %518 = vmatpush.msra.mxu0 %v517
    %v519 = vand.u32 %v398, 4294901760
    %520 = vmatmul.f32.gmra.mxu0 %v519
    %v521 = vpop.f32.mrf.mxu0
    %v522 = vadd.f32 %v498, %v521
    %523 = vdwg.mxu0
    %524 = vmatpush.msra.mxu0 0.0
    %525 = vmatpush.msra.mxu0 0.0
    %526 = vmatpush.msra.mxu0 0.0
    %527 = vmatpush.msra.mxu0 0.0
    %528 = vmatpush.msra.mxu0 0.0
    %529 = vmatpush.msra.mxu0 0.0
    %530 = vmatpush.msra.mxu0 0.0
    %531 = vmatpush.msra.mxu0 0.0
    %532 = vmatpush.msra.mxu0 0.0
    %533 = vmatpush.msra.mxu0 0.0
    %534 = vmatpush.msra.mxu0 0.0
    %535 = vmatpush.msra.mxu0 0.0
    %536 = vmatpush.msra.mxu0 0.0
    %537 = vmatpush.msra.mxu0 0.0
    %538 = vmatpush.msra.mxu0 0.0
    %v539 = vand.u32 %v42, 4294901760
    %540 = vmatpush.msra.mxu0 %v539
    %v541 = vand.u32 %v398, 4294901760
    %542 = vmatmul.f32.gmra.mxu0 %v541
    %v543 = vpop.f32.mrf.mxu0
    %v544 = vadd.f32 %v522, %v543
    %545 = vdwg.mxu0
    %v547 = vsel %vm396, %v395, 0
    %549 = vmatpush.msra.mxu0 0.0
    %550 = vmatpush.msra.mxu0 0.0
    %551 = vmatpush.msra.mxu0 0.0
    %552 = vmatpush.msra.mxu0 0.0
    %553 = vmatpush.msra.mxu0 0.0
    %554 = vmatpush.msra.mxu0 0.0
    %555 = vmatpush.msra.mxu0 0.0
    %556 = vmatpush.msra.mxu0 0.0
    %557 = vmatpush.msra.mxu0 0.0
    %558 = vmatpush.msra.mxu0 0.0
    %559 = vmatpush.msra.mxu0 0.0
    %560 = vmatpush.msra.mxu0 0.0
    %561 = vmatpush.msra.mxu0 0.0
    %562 = vmatpush.msra.mxu0 0.0
    %563 = vmatpush.msra.mxu0 0.0
    %v564 = vand.u32 %v43, 4294901760
    %565 = vmatpush.msra.mxu0 %v564
    %v566 = vand.u32 %v547, 4294901760
    %v567 = vsub.f32 %v547, %v566
    %v568 = vand.u32 %v567, 4294901760
    %v569 = vsub.f32 %v567, %v568
    %v570 = vand.u32 %v569, 4294901760
    %571 = vmatmul.f32.gmra.mxu0 %v570
    %v572 = vpop.f32.mrf.mxu0
    %v573 = vadd.f32 0.0, %v572
    %574 = vdwg.mxu0
    %575 = vmatpush.msra.mxu0 0.0
    %576 = vmatpush.msra.mxu0 0.0
    %577 = vmatpush.msra.mxu0 0.0
    %578 = vmatpush.msra.mxu0 0.0
    %579 = vmatpush.msra.mxu0 0.0
    %580 = vmatpush.msra.mxu0 0.0
    %581 = vmatpush.msra.mxu0 0.0
    %582 = vmatpush.msra.mxu0 0.0
    %583 = vmatpush.msra.mxu0 0.0
    %584 = vmatpush.msra.mxu0 0.0
    %585 = vmatpush.msra.mxu0 0.0
    %586 = vmatpush.msra.mxu0 0.0
    %587 = vmatpush.msra.mxu0 0.0
    %588 = vmatpush.msra.mxu0 0.0
    %589 = vmatpush.msra.mxu0 0.0
    %v590 = vand.u32 %v43, 4294901760
    %v591 = vsub.f32 %v43, %v590
    %v592 = vand.u32 %v591, 4294901760
    %v593 = vsub.f32 %v591, %v592
    %v594 = vand.u32 %v593, 4294901760
    %595 = vmatpush.msra.mxu0 %v594
    %v596 = vand.u32 %v547, 4294901760
    %597 = vmatmul.f32.gmra.mxu0 %v596
    %v598 = vpop.f32.mrf.mxu0
    %v599 = vadd.f32 %v573, %v598
    %600 = vdwg.mxu0
    %601 = vmatpush.msra.mxu0 0.0
    %602 = vmatpush.msra.mxu0 0.0
    %603 = vmatpush.msra.mxu0 0.0
    %604 = vmatpush.msra.mxu0 0.0
    %605 = vmatpush.msra.mxu0 0.0
    %606 = vmatpush.msra.mxu0 0.0
    %607 = vmatpush.msra.mxu0 0.0
    %608 = vmatpush.msra.mxu0 0.0
    %609 = vmatpush.msra.mxu0 0.0
    %610 = vmatpush.msra.mxu0 0.0
    %611 = vmatpush.msra.mxu0 0.0
    %612 = vmatpush.msra.mxu0 0.0
    %613 = vmatpush.msra.mxu0 0.0
    %614 = vmatpush.msra.mxu0 0.0
    %615 = vmatpush.msra.mxu0 0.0
    %v616 = vand.u32 %v43, 4294901760
    %v617 = vsub.f32 %v43, %v616
    %618 = vmatpush.msra.mxu0 %v617
    %v619 = vand.u32 %v547, 4294901760
    %v620 = vsub.f32 %v547, %v619
    %621 = vmatmul.f32.gmra.mxu0 %v620
    %v622 = vpop.f32.mrf.mxu0
    %v623 = vadd.f32 %v599, %v622
    %624 = vdwg.mxu0
    %625 = vmatpush.msra.mxu0 0.0
    %626 = vmatpush.msra.mxu0 0.0
    %627 = vmatpush.msra.mxu0 0.0
    %628 = vmatpush.msra.mxu0 0.0
    %629 = vmatpush.msra.mxu0 0.0
    %630 = vmatpush.msra.mxu0 0.0
    %631 = vmatpush.msra.mxu0 0.0
    %632 = vmatpush.msra.mxu0 0.0
    %633 = vmatpush.msra.mxu0 0.0
    %634 = vmatpush.msra.mxu0 0.0
    %635 = vmatpush.msra.mxu0 0.0
    %636 = vmatpush.msra.mxu0 0.0
    %637 = vmatpush.msra.mxu0 0.0
    %638 = vmatpush.msra.mxu0 0.0
    %639 = vmatpush.msra.mxu0 0.0
    %v640 = vand.u32 %v43, 4294901760
    %641 = vmatpush.msra.mxu0 %v640
    %v642 = vand.u32 %v547, 4294901760
    %v643 = vsub.f32 %v547, %v642
    %v644 = vand.u32 %v643, 4294901760
    %645 = vmatmul.f32.gmra.mxu0 %v644
    %v646 = vpop.f32.mrf.mxu0
    %v647 = vadd.f32 %v623, %v646
    %648 = vdwg.mxu0
    %649 = vmatpush.msra.mxu0 0.0
    %650 = vmatpush.msra.mxu0 0.0
    %651 = vmatpush.msra.mxu0 0.0
    %652 = vmatpush.msra.mxu0 0.0
    %653 = vmatpush.msra.mxu0 0.0
    %654 = vmatpush.msra.mxu0 0.0
    %655 = vmatpush.msra.mxu0 0.0
    %656 = vmatpush.msra.mxu0 0.0
    %657 = vmatpush.msra.mxu0 0.0
    %658 = vmatpush.msra.mxu0 0.0
    %659 = vmatpush.msra.mxu0 0.0
    %660 = vmatpush.msra.mxu0 0.0
    %661 = vmatpush.msra.mxu0 0.0
    %662 = vmatpush.msra.mxu0 0.0
    %663 = vmatpush.msra.mxu0 0.0
    %v664 = vand.u32 %v43, 4294901760
    %v665 = vsub.f32 %v43, %v664
    %v666 = vand.u32 %v665, 4294901760
    %667 = vmatpush.msra.mxu0 %v666
    %v668 = vand.u32 %v547, 4294901760
    %669 = vmatmul.f32.gmra.mxu0 %v668
    %v670 = vpop.f32.mrf.mxu0
    %v671 = vadd.f32 %v647, %v670
    %672 = vdwg.mxu0
    %673 = vmatpush.msra.mxu0 0.0
    %674 = vmatpush.msra.mxu0 0.0
    %675 = vmatpush.msra.mxu0 0.0
    %676 = vmatpush.msra.mxu0 0.0
    %677 = vmatpush.msra.mxu0 0.0
    %678 = vmatpush.msra.mxu0 0.0
    %679 = vmatpush.msra.mxu0 0.0
    %680 = vmatpush.msra.mxu0 0.0
    %681 = vmatpush.msra.mxu0 0.0
    %682 = vmatpush.msra.mxu0 0.0
    %683 = vmatpush.msra.mxu0 0.0
    %684 = vmatpush.msra.mxu0 0.0
    %685 = vmatpush.msra.mxu0 0.0
    %686 = vmatpush.msra.mxu0 0.0
    %687 = vmatpush.msra.mxu0 0.0
    %v688 = vand.u32 %v43, 4294901760
    %689 = vmatpush.msra.mxu0 %v688
    %v690 = vand.u32 %v547, 4294901760
    %691 = vmatmul.f32.gmra.mxu0 %v690
    %v692 = vpop.f32.mrf.mxu0
    %v693 = vadd.f32 %v671, %v692
    %694 = vdwg.mxu0
    %vm695 = vcmask 253952
    %696 = vst.msk [vmem:[#allocation7] sm:$0x1] %vm695, %v544
    %697 = vst.msk [vmem:[#allocation7 + $0x1] sm:$0x1] %vm695, %v693
    // Predicated region
    $region18: #{tpu_custom_call.1} parent=1 // pred_check
      _
    $region19: #{tpu_custom_call.1} parent=1 // pred_check_branch
      %699 = sbr.rel (0) target = $region21
    $region20: #{tpu_custom_call.1} parent=1 // pred_region
      %701 = vsyncadd [#allocation4], 0
      %s702 = sshll.u32 [#allocation7], 4
      %s703 = int_to_ptr.vmem [resolvable:$true] %s702
      %s704 = sshll.u32 %s2, 4
      %s705 = int_to_ptr.hbm [resolvable:$true] %s704
      %710 = dma.vmem_to_hbm [thread:$0]  %s703, 32, %s705, [#allocation4], 16, 16, 1
    $region21: #{tpu_custom_call.1} parent=1 // pred_fallthru
      _
    // Predicated region
    $region22: #{tpu_custom_call.1} parent=1 // pred_check
      _
    $region23: #{tpu_custom_call.1} parent=1 // pred_check_branch
      %712 = sbr.rel (0) target = $region25
    $region24: #{tpu_custom_call.1} parent=1 // pred_region
      %714 = dma.done [#allocation4], 32
    $region25: #{tpu_custom_call.1} parent=1 // pred_fallthru
      _
    %715 = vsyncpa [#allocation3], 1
    %716 = vsyncpa [#allocation6], 1
    %717 = vsyncpa [#allocation4], 1

</llo_original>
